<compile_context>
chip_gen: v6e
topology: v6e:2x2x1
jax: 0.10.0
libtpu: 0.0.40
codegen_flags: <defaults>
</compile_context>

<pallas_src>
import functools

import jax
import jax.numpy as jnp
from jax.experimental import pallas as pl
from jax.experimental.pallas import tpu as pltpu

_LANE = 128  # TPU lane width


def _mlp_kernel(x_ref, w1_ref, b1_ref, w2_ref, b2_ref, w3_ref, b3_ref, o_ref):
    # All three matmuls + bias adds + ReLUs happen on the VMEM tile.
    # MXU inputs stay in the caller's dtype; accumulation is f32.
    x = x_ref[...]

    h = jnp.dot(x, w1_ref[...], preferred_element_type=jnp.float32) + b1_ref[...]
    h = jnp.maximum(h, 0.0)                      # hidden_act = ReLU
    h = h.astype(w2_ref.dtype)                   # keep MXU inputs in weight dtype (no-op for f32)

    h = jnp.dot(h, w2_ref[...], preferred_element_type=jnp.float32) + b2_ref[...]
    h = jnp.maximum(h, 0.0)                      # hidden_act = ReLU
    h = h.astype(w3_ref.dtype)

    y = jnp.dot(h, w3_ref[...], preferred_element_type=jnp.float32) + b3_ref[...]
    # out_act = Identity, output_norm = None
    o_ref[...] = y.astype(o_ref.dtype)


def _choose_block_b(B: int) -> int:
    """Batch tile heuristic (see header)."""
    B8 = -(-B // 8) * 8                  # round up to sublane multiple
    if B8 <= 1024:
        return B8                        # one grid step: best on v5e/v6e
    return 512                           # multiple of 256; grid >= 2 feeds both v7x TCs


@functools.partial(jax.jit, static_argnames=("block_b",))
def mlp_pallas(x, w1, b1, w2, b2, w3, b3, *, block_b=None):
    """x: (B, d_in). w_i: (in_i, out_i) (already transposed). b_i: (1, out_i)."""
    B, d_in = x.shape
    d_out = w3.shape[1]

    # ---- lane-dense output: pad last-layer output features to a multiple of 128
    # (done in the wrapper, NOT in the kernel, to avoid in-kernel reshape copies).
    d_out_p = pl.cdiv(d_out, _LANE) * _LANE
    if d_out_p != d_out:
        w3 = jnp.pad(w3, ((0, 0), (0, d_out_p - d_out)))
        b3 = jnp.pad(b3, ((0, 0), (0, d_out_p - d_out)))

    # ---- batch tiling with ragged-tail handling via zero padding.
    if block_b is None:
        block_b = _choose_block_b(B)
    n_blocks = pl.cdiv(B, block_b)
    B_p = n_blocks * block_b
    if B_p != B:
        x = jnp.pad(x, ((0, B_p - B), (0, 0)))

    # Weights/biases are grid-invariant (constant index_map) -> Pallas keeps them
    # resident and skips re-DMA across grid steps; no per-step traffic.
    full = lambda shape: pl.BlockSpec(shape, lambda i: (0, 0))

    out_p = pl.pallas_call(
        _mlp_kernel,
        out_shape=jax.ShapeDtypeStruct((B_p, d_out_p), x.dtype),
        grid_spec=pltpu.PrefetchScalarGridSpec(
            num_scalar_prefetch=0,
            grid=(n_blocks,),
            in_specs=[
                pl.BlockSpec((block_b, d_in), lambda i: (i, 0)),  # x tile over batch
                full(w1.shape), full(b1.shape),
                full(w2.shape), full(b2.shape),
                full(w3.shape), full(b3.shape),
            ],
            out_specs=pl.BlockSpec((block_b, d_out_p), lambda i: (i, 0)),
        ),
        compiler_params=pltpu.CompilerParams(
            dimension_semantics=("parallel",),     # shards grid steps across v7x TCs
            vmem_limit_bytes=32 * 1024 * 1024,     # explicit; valid on v5e/v6e/v7x
        ),
    )(x, w1, b1, w2, b2, w3, b3)

    # Slice away batch padding and the lane-padding of the output features.
    return out_p[:B, :d_out]


def _init_linear(key, in_dim, out_dim, dtype=jnp.float32):
    """Deterministic init mimicking nn.Linear's uniform(-1/sqrt(in), 1/sqrt(in)).
    Returns W already transposed to (in, out) and b as (1, out)."""
    kw, kb = jax.random.split(key)
    bound = 1.0 / jnp.sqrt(jnp.asarray(in_dim, dtype))
    w = jax.random.uniform(kw, (in_dim, out_dim), dtype, minval=-bound, maxval=bound)
    b = jax.random.uniform(kb, (1, out_dim), dtype, minval=-bound, maxval=bound)
    return w, b


def _mlp_reference(x, w1, b1, w2, b2, w3, b3):
    h = jnp.maximum(x @ w1 + b1, 0.0)
    h = jnp.maximum(h @ w2 + b2, 0.0)
    return h @ w3 + b3


if __name__ == "__main__":
    key = jax.random.PRNGKey(0)
    k_x, k1, k2, k3 = jax.random.split(key, 4)

    # Module hyperparameters (defaults): num_neurons=[64, 32]
    input_dim, output_dim = 16, 8
    h1, h2 = 64, 32
    batch = 200  # deliberately not a multiple of 128 -> exercises ragged-batch padding

    x = jax.random.normal(k_x, (batch, input_dim), jnp.float32)
    w1, b1 = _init_linear(k1, input_dim, h1)
    w2, b2 = _init_linear(k2, h1, h2)
    w3, b3 = _init_linear(k3, h2, output_dim)

    out = mlp_pallas(x, w1, b1, w2, b2, w3, b3)
    out = jax.block_until_ready(out)

    ref = _mlp_reference(x, w1, b1, w2, b2, w3, b3)
    assert out.shape == (batch, output_dim)
    assert jnp.allclose(out, ref, atol=1e-5, rtol=1e-5), "mismatch vs reference"

    print("KERNEL_OK")
</pallas_src>

<mosaic_0001>
module attributes {stable_mosaic.version = 11 : i64} {
  func.func @_mlp_kernel(%arg0: i32, %arg1: memref<200x16xf32, #tpu.memory_space<vmem>>, %arg2: memref<16x64xf32, #tpu.memory_space<vmem>>, %arg3: memref<1x64xf32, #tpu.memory_space<vmem>>, %arg4: memref<64x32xf32, #tpu.memory_space<vmem>>, %arg5: memref<1x32xf32, #tpu.memory_space<vmem>>, %arg6: memref<32x128xf32, #tpu.memory_space<vmem>>, %arg7: memref<1x128xf32, #tpu.memory_space<vmem>>, %arg8: memref<200x128xf32, #tpu.memory_space<vmem>>) attributes {dimension_semantics = [#tpu.dimension_semantics<parallel>], iteration_bounds = array<i64: 1>, scalar_prefetch = 0 : i64, scratch_operands = 0 : i64, tpu.core_type = #tpu.core_type<tc>, window_params = [{transform_indices = @transform_0, window_bounds = array<i64: 200, 16>}, {pipeline_mode = #tpu.pipeline_mode<synchronous>, transform_indices = @transform_1, window_bounds = array<i64: 16, 64>}, {pipeline_mode = #tpu.pipeline_mode<synchronous>, transform_indices = @transform_2, window_bounds = array<i64: 1, 64>}, {pipeline_mode = #tpu.pipeline_mode<synchronous>, transform_indices = @transform_3, window_bounds = array<i64: 64, 32>}, {pipeline_mode = #tpu.pipeline_mode<synchronous>, transform_indices = @transform_4, window_bounds = array<i64: 1, 32>}, {pipeline_mode = #tpu.pipeline_mode<synchronous>, transform_indices = @transform_5, window_bounds = array<i64: 32, 128>}, {pipeline_mode = #tpu.pipeline_mode<synchronous>, transform_indices = @transform_6, window_bounds = array<i64: 1, 128>}, {transform_indices = @transform_7, window_bounds = array<i64: 200, 128>}]} {
    %c0 = arith.constant 0 : index
    %c0_0 = arith.constant 0 : index
    %0 = vector.load %arg1[%c0, %c0_0] : memref<200x16xf32, #tpu.memory_space<vmem>>, vector<200x16xf32>
    %c0_1 = arith.constant 0 : index
    %c0_2 = arith.constant 0 : index
    %1 = vector.load %arg2[%c0_1, %c0_2] : memref<16x64xf32, #tpu.memory_space<vmem>>, vector<16x64xf32>
    %cst = arith.constant dense<0.000000e+00> : vector<200x64xf32>
    %2 = tpu.matmul %0, %1, %cst {dimension_numbers = #tpu.dot_dimension_numbers<[1], [0], [0], [1], [0, 0, 1, 1], [], []>} : vector<200x16xf32>, vector<16x64xf32>, vector<200x64xf32> -> vector<200x64xf32>
    %c0_3 = arith.constant 0 : index
    %c0_4 = arith.constant 0 : index
    %3 = vector.load %arg3[%c0_3, %c0_4] : memref<1x64xf32, #tpu.memory_space<vmem>>, vector<1x64xf32>
    %4 = vector.broadcast %3 : vector<1x64xf32> to vector<200x64xf32>
    %5 = arith.addf %2, %4 : vector<200x64xf32>
    %cst_5 = arith.constant 0.000000e+00 : f32
    %6 = vector.broadcast %cst_5 : f32 to vector<200x64xf32>
    %7 = arith.maximumf %5, %6 : vector<200x64xf32>
    %c0_6 = arith.constant 0 : index
    %c0_7 = arith.constant 0 : index
    %8 = vector.load %arg4[%c0_6, %c0_7] : memref<64x32xf32, #tpu.memory_space<vmem>>, vector<64x32xf32>
    %cst_8 = arith.constant dense<0.000000e+00> : vector<200x32xf32>
    %9 = tpu.matmul %7, %8, %cst_8 {dimension_numbers = #tpu.dot_dimension_numbers<[1], [0], [0], [1], [0, 0, 1, 1], [], []>} : vector<200x64xf32>, vector<64x32xf32>, vector<200x32xf32> -> vector<200x32xf32>
    %c0_9 = arith.constant 0 : index
    %c0_10 = arith.constant 0 : index
    %10 = vector.load %arg5[%c0_9, %c0_10] : memref<1x32xf32, #tpu.memory_space<vmem>>, vector<1x32xf32>
    %11 = vector.broadcast %10 : vector<1x32xf32> to vector<200x32xf32>
    %12 = arith.addf %9, %11 : vector<200x32xf32>
    %cst_11 = arith.constant 0.000000e+00 : f32
    %13 = vector.broadcast %cst_11 : f32 to vector<200x32xf32>
    %14 = arith.maximumf %12, %13 : vector<200x32xf32>
    %c0_12 = arith.constant 0 : index
    %c0_13 = arith.constant 0 : index
    %15 = vector.load %arg6[%c0_12, %c0_13] : memref<32x128xf32, #tpu.memory_space<vmem>>, vector<32x128xf32>
    %cst_14 = arith.constant dense<0.000000e+00> : vector<200x128xf32>
    %16 = tpu.matmul %14, %15, %cst_14 {dimension_numbers = #tpu.dot_dimension_numbers<[1], [0], [0], [1], [0, 0, 1, 1], [], []>} : vector<200x32xf32>, vector<32x128xf32>, vector<200x128xf32> -> vector<200x128xf32>
    %c0_15 = arith.constant 0 : index
    %c0_16 = arith.constant 0 : index
    %17 = vector.load %arg7[%c0_15, %c0_16] : memref<1x128xf32, #tpu.memory_space<vmem>>, vector<1x128xf32>
    %18 = vector.broadcast %17 : vector<1x128xf32> to vector<200x128xf32>
    %19 = arith.addf %16, %18 : vector<200x128xf32>
    %c0_17 = arith.constant 0 : index
    %c0_18 = arith.constant 0 : index
    %20 = vector.load %arg8[%c0_17, %c0_18] : memref<200x128xf32, #tpu.memory_space<vmem>>, vector<200x128xf32>
    tpu.vector_store %arg8[%c0_17, %c0_18], %19 {strides = array<i32>} : memref<200x128xf32, #tpu.memory_space<vmem>>, vector<200x128xf32>,
    return
  }
  func.func @transform_0(%arg0: i32) -> (i32, i32) {
    %c0_i32 = arith.constant 0 : i32
    %c0_i32_0 = arith.constant 0 : i32
    return %arg0, %c0_i32 : i32, i32
  }
  func.func @transform_1(%arg0: i32) -> (i32, i32) {
    %c0_i32 = arith.constant 0 : i32
    %c0_i32_0 = arith.constant 0 : i32
    %c0_i32_1 = arith.constant 0 : i32
    return %c0_i32, %c0_i32_0 : i32, i32
  }
  func.func @transform_2(%arg0: i32) -> (i32, i32) {
    %c0_i32 = arith.constant 0 : i32
    %c0_i32_0 = arith.constant 0 : i32
    %c0_i32_1 = arith.constant 0 : i32
    return %c0_i32, %c0_i32_0 : i32, i32
  }
  func.func @transform_3(%arg0: i32) -> (i32, i32) {
    %c0_i32 = arith.constant 0 : i32
    %c0_i32_0 = arith.constant 0 : i32
    %c0_i32_1 = arith.constant 0 : i32
    return %c0_i32, %c0_i32_0 : i32, i32
  }
  func.func @transform_4(%arg0: i32) -> (i32, i32) {
    %c0_i32 = arith.constant 0 : i32
    %c0_i32_0 = arith.constant 0 : i32
    %c0_i32_1 = arith.constant 0 : i32
    return %c0_i32, %c0_i32_0 : i32, i32
  }
  func.func @transform_5(%arg0: i32) -> (i32, i32) {
    %c0_i32 = arith.constant 0 : i32
    %c0_i32_0 = arith.constant 0 : i32
    %c0_i32_1 = arith.constant 0 : i32
    return %c0_i32, %c0_i32_0 : i32, i32
  }
  func.func @transform_6(%arg0: i32) -> (i32, i32) {
    %c0_i32 = arith.constant 0 : i32
    %c0_i32_0 = arith.constant 0 : i32
    %c0_i32_1 = arith.constant 0 : i32
    return %c0_i32, %c0_i32_0 : i32, i32
  }
  func.func @transform_7(%arg0: i32) -> (i32, i32) {
    %c0_i32 = arith.constant 0 : i32
    %c0_i32_0 = arith.constant 0 : i32
    return %arg0, %c0_i32 : i32, i32
  }
}

</mosaic_0001>

<llo_original>
// kernel: mlp_pallas.1
$region0: #{mlp_pallas.1}
  #allocation0 [shape = 'u32[]', space=smem, size = 0x4, offset = 0x4, fixed_abs, tag = 'smem constant byte address 0x4 - core index']
  #allocation1 [shape = 'u32[144,128]{1,0:T(1,128)}', space=vmem, size = 0x12000, scoped, tag = 'internal scratch']
  %s0 = inlined_call_operand.vmem [shape: f32[200,16], index: 0, kind: input, shape index: {}]
  %s1 = inlined_call_operand.vmem [shape: f32[16,64], index: 1, kind: input, shape index: {}]
  %s2 = inlined_call_operand.vmem [shape: f32[1,64], index: 2, kind: input, shape index: {}]
  %s3 = inlined_call_operand.vmem [shape: f32[64,32], index: 3, kind: input, shape index: {}]
  %s4 = inlined_call_operand.vmem [shape: f32[1,32], index: 4, kind: input, shape index: {}]
  %s5 = inlined_call_operand.vmem [shape: f32[32,128], index: 5, kind: input, shape index: {}]
  %s6 = inlined_call_operand.vmem [shape: f32[1,128], index: 6, kind: input, shape index: {}]
  %s7 = inlined_call_operand.vmem [shape: f32[200,128], index: 7, kind: output, shape index: {}]
  %s8 = sld [smem:[#allocation0]]
  $region38: #{mlp_pallas.1} parent=0
    _
  %s10 = ssub.s32 1, %s8
  %s11 = scalar_select 0, %s10, %s8
  // Predicated region
  $region2: #{mlp_pallas.1} parent=0 // pred_check
    _
  $region3: #{mlp_pallas.1} parent=0 // pred_check_branch
    %13 = sbr.rel (0) target = $region5
  $region4: #{mlp_pallas.1} parent=0 // pred_region
    _
  $region5: #{mlp_pallas.1} parent=0 // pred_fallthru
    _
  // Predicated region
  $region6: #{mlp_pallas.1} parent=0 // pred_check
    _
  $region7: #{mlp_pallas.1} parent=0 // pred_check_branch
    %15 = sbr.rel (0) target = $region9
  $region8: #{mlp_pallas.1} parent=0 // pred_region
    _
  $region9: #{mlp_pallas.1} parent=0 // pred_fallthru
    _
  // Predicated region
  $region10: #{mlp_pallas.1} parent=0 // pred_check
    _
  $region11: #{mlp_pallas.1} parent=0 // pred_check_branch
    %17 = sbr.rel (0) target = $region13
  $region12: #{mlp_pallas.1} parent=0 // pred_region
    _
  $region13: #{mlp_pallas.1} parent=0 // pred_fallthru
    _
  // Predicated region
  $region14: #{mlp_pallas.1} parent=0 // pred_check
    _
  $region15: #{mlp_pallas.1} parent=0 // pred_check_branch
    %19 = sbr.rel (0) target = $region17
  $region16: #{mlp_pallas.1} parent=0 // pred_region
    _
  $region17: #{mlp_pallas.1} parent=0 // pred_fallthru
    _
  // Predicated region
  $region18: #{mlp_pallas.1} parent=0 // pred_check
    _
  $region19: #{mlp_pallas.1} parent=0 // pred_check_branch
    %21 = sbr.rel (0) target = $region21
  $region20: #{mlp_pallas.1} parent=0 // pred_region
    _
  $region21: #{mlp_pallas.1} parent=0 // pred_fallthru
    _
  // Predicated region
  $region22: #{mlp_pallas.1} parent=0 // pred_check
    _
  $region23: #{mlp_pallas.1} parent=0 // pred_check_branch
    %23 = sbr.rel (0) target = $region25
  $region24: #{mlp_pallas.1} parent=0 // pred_region
    _
  $region25: #{mlp_pallas.1} parent=0 // pred_fallthru
    _
  // Predicated region
  $region26: #{mlp_pallas.1} parent=0 // pred_check
    _
  $region27: #{mlp_pallas.1} parent=0 // pred_check_branch
    %25 = sbr.rel (0) target = $region29
  $region28: #{mlp_pallas.1} parent=0 // pred_region
    _
  $region29: #{mlp_pallas.1} parent=0 // pred_fallthru
    _
  %v26 = vld [vmem:[%s0] sm:$0xff]
  %v27 = vld [vmem:[%s0 + $0x8] sm:$0xff]
  %v28 = vld [vmem:[%s0 + $0x10] sm:$0xff]
  %v29 = vld [vmem:[%s0 + $0x18] sm:$0xff]
  %v30 = vld [vmem:[%s0 + $0x20] sm:$0xff]
  %v31 = vld [vmem:[%s0 + $0x28] sm:$0xff]
  %v32 = vld [vmem:[%s0 + $0x30] sm:$0xff]
  %v33 = vld [vmem:[%s0 + $0x38] sm:$0xff]
  %v34 = vld [vmem:[%s0 + $0x40] sm:$0xff]
  %v35 = vld [vmem:[%s0 + $0x48] sm:$0xff]
  %v36 = vld [vmem:[%s0 + $0x50] sm:$0xff]
  %v37 = vld [vmem:[%s0 + $0x58] sm:$0xff]
  %v38 = vld [vmem:[%s0 + $0x60] sm:$0xff]
  %v39 = vld [vmem:[%s0 + $0x68] sm:$0xff]
  %v40 = vld [vmem:[%s0 + $0x70] sm:$0xff]
  %v41 = vld [vmem:[%s0 + $0x78] sm:$0xff]
  %v42 = vld [vmem:[%s0 + $0x80] sm:$0xff]
  %v43 = vld [vmem:[%s0 + $0x88] sm:$0xff]
  %v44 = vld [vmem:[%s0 + $0x90] sm:$0xff]
  %v45 = vld [vmem:[%s0 + $0x98] sm:$0xff]
  %v46 = vld [vmem:[%s0 + $0xa0] sm:$0xff]
  %v47 = vld [vmem:[%s0 + $0xa8] sm:$0xff]
  %v48 = vld [vmem:[%s0 + $0xb0] sm:$0xff]
  %v49 = vld [vmem:[%s0 + $0xb8] sm:$0xff]
  %v50 = vld [vmem:[%s0 + $0xc0] sm:$0xff]
  %v51 = vld [vmem:[%s1] sm:$0xff]
  %v52 = vld [vmem:[%s1 + $0x8] sm:$0xff]
  %v53 = vld [vmem:[%s2] sm:$0x1]
  %v55 = vlaneseq
  %v56 = vshrl.u32 %v55, 7
  %v57 = vsub.s32 0, %v56
  %v58 = vrot.slane %v53, %v57
  %vm60 = vcmask 130048
  %v62 = vsel %vm60, %v26, 0
  %v65 = vsel %vm60, %v27, 0
  %v68 = vsel %vm60, %v28, 0
  %v71 = vsel %vm60, %v29, 0
  %v74 = vsel %vm60, %v30, 0
  %v77 = vsel %vm60, %v31, 0
  %v80 = vsel %vm60, %v32, 0
  %v83 = vsel %vm60, %v33, 0
  %v86 = vsel %vm60, %v34, 0
  %v89 = vsel %vm60, %v35, 0
  %v92 = vsel %vm60, %v36, 0
  %v95 = vsel %vm60, %v37, 0
  %v98 = vsel %vm60, %v38, 0
  %v101 = vsel %vm60, %v39, 0
  %v104 = vsel %vm60, %v40, 0
  %v107 = vsel %vm60, %v41, 0
  %v110 = vsel %vm60, %v42, 0
  %v113 = vsel %vm60, %v43, 0
  %v116 = vsel %vm60, %v44, 0
  %v119 = vsel %vm60, %v45, 0
  %v122 = vsel %vm60, %v46, 0
  %v125 = vsel %vm60, %v47, 0
  %v128 = vsel %vm60, %v48, 0
  %v131 = vsel %vm60, %v49, 0
  %v134 = vsel %vm60, %v50, 0
  %136 = vmatprep.subr.mxu0 0.0
  %137 = vmatpush1.msra.mxu0 0.0
  %138 = vmatprep.subr.mxu0 0.0
  %139 = vmatpush1.msra.mxu0 0.0
  %140 = vmatprep.subr.mxu0 0.0
  %141 = vmatpush1.msra.mxu0 0.0
  %142 = vmatprep.subr.mxu0 0.0
  %143 = vmatpush1.msra.mxu0 0.0
  %144 = vmatprep.subr.mxu0 0.0
  %145 = vmatpush1.msra.mxu0 0.0
  %146 = vmatprep.subr.mxu0 0.0
  %147 = vmatpush1.msra.mxu0 0.0
  %148 = vmatprep.subr.mxu0 0.0
  %149 = vmatpush1.msra.mxu0 0.0
  %150 = vmatprep.subr.mxu0 0.0
  %151 = vmatpush1.msra.mxu0 0.0
  %152 = vmatprep.subr.mxu0 0.0
  %153 = vmatpush1.msra.mxu0 0.0
  %154 = vmatprep.subr.mxu0 0.0
  %155 = vmatpush1.msra.mxu0 0.0
  %156 = vmatprep.subr.mxu0 0.0
  %157 = vmatpush1.msra.mxu0 0.0
  %158 = vmatprep.subr.mxu0 0.0
  %159 = vmatpush1.msra.mxu0 0.0
  %160 = vmatprep.subr.mxu0 0.0
  %161 = vmatpush1.msra.mxu0 0.0
  %162 = vmatprep.subr.mxu0 0.0
  %163 = vmatpush1.msra.mxu0 0.0
  %164 = vmatprep.subr.mxu0 0.0
  %165 = vmatpush1.msra.mxu0 %v52
  %166 = vmatprep.subr.mxu0 0.0
  %167 = vmatpush1.msra.mxu0 %v51
  %168 = vmatprep.subr.mxu0 0.0
  %169 = vmatpush2.msra.mxu0 0.0
  %170 = vmatprep.subr.mxu0 0.0
  %171 = vmatpush2.msra.mxu0 0.0
  %172 = vmatprep.subr.mxu0 0.0
  %173 = vmatpush2.msra.mxu0 0.0
  %174 = vmatprep.subr.mxu0 0.0
  %175 = vmatpush2.msra.mxu0 0.0
  %176 = vmatprep.subr.mxu0 0.0
  %177 = vmatpush2.msra.mxu0 0.0
  %178 = vmatprep.subr.mxu0 0.0
  %179 = vmatpush2.msra.mxu0 0.0
  %180 = vmatprep.subr.mxu0 0.0
  %181 = vmatpush2.msra.mxu0 0.0
  %182 = vmatprep.subr.mxu0 0.0
  %183 = vmatpush2.msra.mxu0 0.0
  %184 = vmatprep.subr.mxu0 0.0
  %185 = vmatpush2.msra.mxu0 0.0
  %186 = vmatprep.subr.mxu0 0.0
  %187 = vmatpush2.msra.mxu0 0.0
  %188 = vmatprep.subr.mxu0 0.0
  %189 = vmatpush2.msra.mxu0 0.0
  %190 = vmatprep.subr.mxu0 0.0
  %191 = vmatpush2.msra.mxu0 0.0
  %192 = vmatprep.subr.mxu0 0.0
  %193 = vmatpush2.msra.mxu0 0.0
  %194 = vmatprep.subr.mxu0 0.0
  %195 = vmatpush2.msra.mxu0 0.0
  %196 = vmatprep.subr.mxu0 0.0
  %197 = vmatpush2.msra.mxu0 0.0
  %198 = vmatprep.subr.mxu0 0.0
  %199 = vmatpush2.msra.mxu0 0.0
  %200 = vmatprep.mubr.f32.mxu0 0.0
  %201 = vmatmul.mubr.f32.gmra.mxu0 %v62
  %v202 = vpop.f32.mrf.mxu0
  %v203 = vadd.f32 %v58, %v202
  %v204 = vpop.f32.mrf.mxu0
  %205 = vmatprep.mubr.f32.mxu0 0.0
  %206 = vmatmul.mubr.f32.gmra.mxu0 %v65
  %v207 = vpop.f32.mrf.mxu0
  %v208 = vadd.f32 %v58, %v207
  %v209 = vpop.f32.mrf.mxu0
  %210 = vmatprep.mubr.f32.mxu0 0.0
  %211 = vmatmul.mubr.f32.gmra.mxu0 %v68
  %v212 = vpop.f32.mrf.mxu0
  %v213 = vadd.f32 %v58, %v212
  %v214 = vpop.f32.mrf.mxu0
  %215 = vmatprep.mubr.f32.mxu0 0.0
  %216 = vmatmul.mubr.f32.gmra.mxu0 %v71
  %v217 = vpop.f32.mrf.mxu0
  %v218 = vadd.f32 %v58, %v217
  %v219 = vpop.f32.mrf.mxu0
  %220 = vmatprep.mubr.f32.mxu0 0.0
  %221 = vmatmul.mubr.f32.gmra.mxu0 %v74
  %v222 = vpop.f32.mrf.mxu0
  %v223 = vadd.f32 %v58, %v222
  %v224 = vpop.f32.mrf.mxu0
  %225 = vmatprep.mubr.f32.mxu0 0.0
  %226 = vmatmul.mubr.f32.gmra.mxu0 %v77
  %v227 = vpop.f32.mrf.mxu0
  %v228 = vadd.f32 %v58, %v227
  %v229 = vpop.f32.mrf.mxu0
  %230 = vmatprep.mubr.f32.mxu0 0.0
  %231 = vmatmul.mubr.f32.gmra.mxu0 %v80
  %v232 = vpop.f32.mrf.mxu0
  %v233 = vadd.f32 %v58, %v232
  %v234 = vpop.f32.mrf.mxu0
  %235 = vmatprep.mubr.f32.mxu0 0.0
  %236 = vmatmul.mubr.f32.gmra.mxu0 %v83
  %v237 = vpop.f32.mrf.mxu0
  %v238 = vadd.f32 %v58, %v237
  %v239 = vpop.f32.mrf.mxu0
  %240 = vmatprep.mubr.f32.mxu0 0.0
  %241 = vmatmul.mubr.f32.gmra.mxu0 %v86
  %v242 = vpop.f32.mrf.mxu0
  %v243 = vadd.f32 %v58, %v242
  %v244 = vpop.f32.mrf.mxu0
  %245 = vmatprep.mubr.f32.mxu0 0.0
  %246 = vmatmul.mubr.f32.gmra.mxu0 %v89
  %v247 = vpop.f32.mrf.mxu0
  %v248 = vadd.f32 %v58, %v247
  %v249 = vpop.f32.mrf.mxu0
  %250 = vmatprep.mubr.f32.mxu0 0.0
  %251 = vmatmul.mubr.f32.gmra.mxu0 %v92
  %v252 = vpop.f32.mrf.mxu0
  %v253 = vadd.f32 %v58, %v252
  %v254 = vpop.f32.mrf.mxu0
  %255 = vmatprep.mubr.f32.mxu0 0.0
  %256 = vmatmul.mubr.f32.gmra.mxu0 %v95
  %v257 = vpop.f32.mrf.mxu0
  %v258 = vadd.f32 %v58, %v257
  %v259 = vpop.f32.mrf.mxu0
  %260 = vmatprep.mubr.f32.mxu0 0.0
  %261 = vmatmul.mubr.f32.gmra.mxu0 %v98
  %v262 = vpop.f32.mrf.mxu0
  %v263 = vadd.f32 %v58, %v262
  %v264 = vpop.f32.mrf.mxu0
  %265 = vmatprep.mubr.f32.mxu0 0.0
  %266 = vmatmul.mubr.f32.gmra.mxu0 %v101
  %v267 = vpop.f32.mrf.mxu0
  %v268 = vadd.f32 %v58, %v267
  %v269 = vpop.f32.mrf.mxu0
  %270 = vmatprep.mubr.f32.mxu0 0.0
  %271 = vmatmul.mubr.f32.gmra.mxu0 %v104
  %v272 = vpop.f32.mrf.mxu0
  %v273 = vadd.f32 %v58, %v272
  %v274 = vpop.f32.mrf.mxu0
  %275 = vmatprep.mubr.f32.mxu0 0.0
  %276 = vmatmul.mubr.f32.gmra.mxu0 %v107
  %v277 = vpop.f32.mrf.mxu0
  %v278 = vadd.f32 %v58, %v277
  %v279 = vpop.f32.mrf.mxu0
  %280 = vmatprep.mubr.f32.mxu0 0.0
  %281 = vmatmul.mubr.f32.gmra.mxu0 %v110
  %v282 = vpop.f32.mrf.mxu0
  %v283 = vadd.f32 %v58, %v282
  %v284 = vpop.f32.mrf.mxu0
  %285 = vmatprep.mubr.f32.mxu0 0.0
  %286 = vmatmul.mubr.f32.gmra.mxu0 %v113
  %v287 = vpop.f32.mrf.mxu0
  %v288 = vadd.f32 %v58, %v287
  %v289 = vpop.f32.mrf.mxu0
  %290 = vmatprep.mubr.f32.mxu0 0.0
  %291 = vmatmul.mubr.f32.gmra.mxu0 %v116
  %v292 = vpop.f32.mrf.mxu0
  %v293 = vadd.f32 %v58, %v292
  %v294 = vpop.f32.mrf.mxu0
  %295 = vmatprep.mubr.f32.mxu0 0.0
  %296 = vmatmul.mubr.f32.gmra.mxu0 %v119
  %v297 = vpop.f32.mrf.mxu0
  %v298 = vadd.f32 %v58, %v297
  %v299 = vpop.f32.mrf.mxu0
  %300 = vmatprep.mubr.f32.mxu0 0.0
  %301 = vmatmul.mubr.f32.gmra.mxu0 %v122
  %v302 = vpop.f32.mrf.mxu0
  %v303 = vadd.f32 %v58, %v302
  %v304 = vpop.f32.mrf.mxu0
  %305 = vmatprep.mubr.f32.mxu0 0.0
  %306 = vmatmul.mubr.f32.gmra.mxu0 %v125
  %v307 = vpop.f32.mrf.mxu0
  %v308 = vadd.f32 %v58, %v307
  %v309 = vpop.f32.mrf.mxu0
  %310 = vmatprep.mubr.f32.mxu0 0.0
  %311 = vmatmul.mubr.f32.gmra.mxu0 %v128
  %v312 = vpop.f32.mrf.mxu0
  %v313 = vadd.f32 %v58, %v312
  %v314 = vpop.f32.mrf.mxu0
  %315 = vmatprep.mubr.f32.mxu0 0.0
  %316 = vmatmul.mubr.f32.gmra.mxu0 %v131
  %v317 = vpop.f32.mrf.mxu0
  %v318 = vadd.f32 %v58, %v317
  %v319 = vpop.f32.mrf.mxu0
  %320 = vmatprep.mubr.f32.mxu0 0.0
  %321 = vmatmul.mubr.f32.gmra.mxu0 %v134
  %v322 = vpop.f32.mrf.mxu0
  %v323 = vadd.f32 %v58, %v322
  %v324 = vpop.f32.mrf.mxu0
  %325 = vdwg.mxu0
  %v326 = vmax.f32 %v203, 0.0
  %v327 = vmax.f32 %v208, 0.0
  %v328 = vmax.f32 %v213, 0.0
  %v329 = vmax.f32 %v218, 0.0
  %v330 = vmax.f32 %v223, 0.0
  %v331 = vmax.f32 %v228, 0.0
  %v332 = vmax.f32 %v233, 0.0
  %v333 = vmax.f32 %v238, 0.0
  %v334 = vmax.f32 %v243, 0.0
  %v335 = vmax.f32 %v248, 0.0
  %v336 = vmax.f32 %v253, 0.0
  %v337 = vmax.f32 %v258, 0.0
  %v338 = vmax.f32 %v263, 0.0
  %v339 = vmax.f32 %v268, 0.0
  %v340 = vmax.f32 %v273, 0.0
  %v341 = vmax.f32 %v278, 0.0
  %v342 = vmax.f32 %v283, 0.0
  %v343 = vmax.f32 %v288, 0.0
  %v344 = vmax.f32 %v293, 0.0
  %v345 = vmax.f32 %v298, 0.0
  %v346 = vmax.f32 %v303, 0.0
  %v347 = vmax.f32 %v308, 0.0
  %v348 = vmax.f32 %v313, 0.0
  %v349 = vmax.f32 %v318, 0.0
  %v350 = vmax.f32 %v323, 0.0
  %v351 = vld [vmem:[%s3] sm:$0xff]
  %v352 = vld [vmem:[%s3 + $0x8] sm:$0xff]
  %v353 = vld [vmem:[%s3 + $0x10] sm:$0xff]
  %v354 = vld [vmem:[%s3 + $0x18] sm:$0xff]
  %v355 = vld [vmem:[%s3 + $0x20] sm:$0xff]
  %v356 = vld [vmem:[%s3 + $0x28] sm:$0xff]
  %v357 = vld [vmem:[%s3 + $0x30] sm:$0xff]
  %v358 = vld [vmem:[%s3 + $0x38] sm:$0xff]
  %v359 = vld [vmem:[%s4] sm:$0x1]
  %v361 = vlaneseq
  %v362 = vshrl.u32 %v361, 7
  %v363 = vsub.s32 0, %v362
  %v364 = vrot.slane %v359, %v363
  %vm366 = vcmask 523264
  %v368 = vsel %vm366, %v326, 0
  %v371 = vsel %vm366, %v327, 0
  %v374 = vsel %vm366, %v328, 0
  %v377 = vsel %vm366, %v329, 0
  %v380 = vsel %vm366, %v330, 0
  %v383 = vsel %vm366, %v331, 0
  %v386 = vsel %vm366, %v332, 0
  %v389 = vsel %vm366, %v333, 0
  %v392 = vsel %vm366, %v334, 0
  %v395 = vsel %vm366, %v335, 0
  %v398 = vsel %vm366, %v336, 0
  %v401 = vsel %vm366, %v337, 0
  %v404 = vsel %vm366, %v338, 0
  %v407 = vsel %vm366, %v339, 0
  %v410 = vsel %vm366, %v340, 0
  %v413 = vsel %vm366, %v341, 0
  %v416 = vsel %vm366, %v342, 0
  %v419 = vsel %vm366, %v343, 0
  %v422 = vsel %vm366, %v344, 0
  %v425 = vsel %vm366, %v345, 0
  %v428 = vsel %vm366, %v346, 0
  %v431 = vsel %vm366, %v347, 0
  %v434 = vsel %vm366, %v348, 0
  %v437 = vsel %vm366, %v349, 0
  %v440 = vsel %vm366, %v350, 0
  %442 = vmatprep.subr.mxu0 0.0
  %443 = vmatpush1.msra.mxu0 0.0
  %444 = vmatprep.subr.mxu0 0.0
  %445 = vmatpush1.msra.mxu0 0.0
  %446 = vmatprep.subr.mxu0 0.0
  %447 = vmatpush1.msra.mxu0 0.0
  %448 = vmatprep.subr.mxu0 0.0
  %449 = vmatpush1.msra.mxu0 0.0
  %450 = vmatprep.subr.mxu0 0.0
  %451 = vmatpush1.msra.mxu0 0.0
  %452 = vmatprep.subr.mxu0 0.0
  %453 = vmatpush1.msra.mxu0 0.0
  %454 = vmatprep.subr.mxu0 0.0
  %455 = vmatpush1.msra.mxu0 0.0
  %456 = vmatprep.subr.mxu0 0.0
  %457 = vmatpush1.msra.mxu0 0.0
  %458 = vmatprep.subr.mxu0 0.0
  %459 = vmatpush1.msra.mxu0 %v358
  %460 = vmatprep.subr.mxu0 0.0
  %461 = vmatpush1.msra.mxu0 %v357
  %462 = vmatprep.subr.mxu0 0.0
  %463 = vmatpush1.msra.mxu0 %v356
  %464 = vmatprep.subr.mxu0 0.0
  %465 = vmatpush1.msra.mxu0 %v355
  %466 = vmatprep.subr.mxu0 0.0
  %467 = vmatpush1.msra.mxu0 %v354
  %468 = vmatprep.subr.mxu0 0.0
  %469 = vmatpush1.msra.mxu0 %v353
  %470 = vmatprep.subr.mxu0 0.0
  %471 = vmatpush1.msra.mxu0 %v352
  %472 = vmatprep.subr.mxu0 0.0
  %473 = vmatpush1.msra.mxu0 %v351
  %474 = vmatprep.subr.mxu0 0.0
  %475 = vmatpush2.msra.mxu0 0.0
  %476 = vmatprep.subr.mxu0 0.0
  %477 = vmatpush2.msra.mxu0 0.0
  %478 = vmatprep.subr.mxu0 0.0
  %479 = vmatpush2.msra.mxu0 0.0
  %480 = vmatprep.subr.mxu0 0.0
  %481 = vmatpush2.msra.mxu0 0.0
  %482 = vmatprep.subr.mxu0 0.0
  %483 = vmatpush2.msra.mxu0 0.0
  %484 = vmatprep.subr.mxu0 0.0
  %485 = vmatpush2.msra.mxu0 0.0
  %486 = vmatprep.subr.mxu0 0.0
  %487 = vmatpush2.msra.mxu0 0.0
  %488 = vmatprep.subr.mxu0 0.0
  %489 = vmatpush2.msra.mxu0 0.0
  %490 = vmatprep.subr.mxu0 0.0
  %491 = vmatpush2.msra.mxu0 0.0
  %492 = vmatprep.subr.mxu0 0.0
  %493 = vmatpush2.msra.mxu0 0.0
  %494 = vmatprep.subr.mxu0 0.0
  %495 = vmatpush2.msra.mxu0 0.0
  %496 = vmatprep.subr.mxu0 0.0
  %497 = vmatpush2.msra.mxu0 0.0
  %498 = vmatprep.subr.mxu0 0.0
  %499 = vmatpush2.msra.mxu0 0.0
  %500 = vmatprep.subr.mxu0 0.0
  %501 = vmatpush2.msra.mxu0 0.0
  %502 = vmatprep.subr.mxu0 0.0
  %503 = vmatpush2.msra.mxu0 0.0
  %504 = vmatprep.subr.mxu0 0.0
  %505 = vmatpush2.msra.mxu0 0.0
  %506 = vmatprep.mubr.f32.mxu0 0.0
  %507 = vmatmul.mubr.f32.gmra.mxu0 %v368
  %v508 = vpop.f32.mrf.mxu0
  %v509 = vadd.f32 %v364, %v508
  %v510 = vpop.f32.mrf.mxu0
  %511 = vmatprep.mubr.f32.mxu0 0.0
  %512 = vmatmul.mubr.f32.gmra.mxu0 %v371
  %v513 = vpop.f32.mrf.mxu0
  %v514 = vadd.f32 %v364, %v513
  %v515 = vpop.f32.mrf.mxu0
  %516 = vmatprep.mubr.f32.mxu0 0.0
  %517 = vmatmul.mubr.f32.gmra.mxu0 %v374
  %v518 = vpop.f32.mrf.mxu0
  %v519 = vadd.f32 %v364, %v518
  %v520 = vpop.f32.mrf.mxu0
  %521 = vmatprep.mubr.f32.mxu0 0.0
  %522 = vmatmul.mubr.f32.gmra.mxu0 %v377
  %v523 = vpop.f32.mrf.mxu0
  %v524 = vadd.f32 %v364, %v523
  %v525 = vpop.f32.mrf.mxu0
  %526 = vmatprep.mubr.f32.mxu0 0.0
  %527 = vmatmul.mubr.f32.gmra.mxu0 %v380
  %v528 = vpop.f32.mrf.mxu0
  %v529 = vadd.f32 %v364, %v528
  %v530 = vpop.f32.mrf.mxu0
  %531 = vmatprep.mubr.f32.mxu0 0.0
  %532 = vmatmul.mubr.f32.gmra.mxu0 %v383
  %v533 = vpop.f32.mrf.mxu0
  %v534 = vadd.f32 %v364, %v533
  %v535 = vpop.f32.mrf.mxu0
  %536 = vmatprep.mubr.f32.mxu0 0.0
  %537 = vmatmul.mubr.f32.gmra.mxu0 %v386
  %v538 = vpop.f32.mrf.mxu0
  %v539 = vadd.f32 %v364, %v538
  %v540 = vpop.f32.mrf.mxu0
  %541 = vmatprep.mubr.f32.mxu0 0.0
  %542 = vmatmul.mubr.f32.gmra.mxu0 %v389
  %v543 = vpop.f32.mrf.mxu0
  %v544 = vadd.f32 %v364, %v543
  %v545 = vpop.f32.mrf.mxu0
  %546 = vmatprep.mubr.f32.mxu0 0.0
  %547 = vmatmul.mubr.f32.gmra.mxu0 %v392
  %v548 = vpop.f32.mrf.mxu0
  %v549 = vadd.f32 %v364, %v548
  %v550 = vpop.f32.mrf.mxu0
  %551 = vmatprep.mubr.f32.mxu0 0.0
  %552 = vmatmul.mubr.f32.gmra.mxu0 %v395
  %v553 = vpop.f32.mrf.mxu0
  %v554 = vadd.f32 %v364, %v553
  %v555 = vpop.f32.mrf.mxu0
  %556 = vmatprep.mubr.f32.mxu0 0.0
  %557 = vmatmul.mubr.f32.gmra.mxu0 %v398
  %v558 = vpop.f32.mrf.mxu0
  %v559 = vadd.f32 %v364, %v558
  %v560 = vpop.f32.mrf.mxu0
  %561 = vmatprep.mubr.f32.mxu0 0.0
  %562 = vmatmul.mubr.f32.gmra.mxu0 %v401
  %v563 = vpop.f32.mrf.mxu0
  %v564 = vadd.f32 %v364, %v563
  %v565 = vpop.f32.mrf.mxu0
  %566 = vmatprep.mubr.f32.mxu0 0.0
  %567 = vmatmul.mubr.f32.gmra.mxu0 %v404
  %v568 = vpop.f32.mrf.mxu0
  %v569 = vadd.f32 %v364, %v568
  %v570 = vpop.f32.mrf.mxu0
  %571 = vmatprep.mubr.f32.mxu0 0.0
  %572 = vmatmul.mubr.f32.gmra.mxu0 %v407
  %v573 = vpop.f32.mrf.mxu0
  %v574 = vadd.f32 %v364, %v573
  %v575 = vpop.f32.mrf.mxu0
  %576 = vmatprep.mubr.f32.mxu0 0.0
  %577 = vmatmul.mubr.f32.gmra.mxu0 %v410
  %v578 = vpop.f32.mrf.mxu0
  %v579 = vadd.f32 %v364, %v578
  %v580 = vpop.f32.mrf.mxu0
  %581 = vmatprep.mubr.f32.mxu0 0.0
  %582 = vmatmul.mubr.f32.gmra.mxu0 %v413
  %v583 = vpop.f32.mrf.mxu0
  %v584 = vadd.f32 %v364, %v583
  %v585 = vpop.f32.mrf.mxu0
  %586 = vmatprep.mubr.f32.mxu0 0.0
  %587 = vmatmul.mubr.f32.gmra.mxu0 %v416
  %v588 = vpop.f32.mrf.mxu0
  %v589 = vadd.f32 %v364, %v588
  %v590 = vpop.f32.mrf.mxu0
  %591 = vmatprep.mubr.f32.mxu0 0.0
  %592 = vmatmul.mubr.f32.gmra.mxu0 %v419
  %v593 = vpop.f32.mrf.mxu0
  %v594 = vadd.f32 %v364, %v593
  %v595 = vpop.f32.mrf.mxu0
  %596 = vmatprep.mubr.f32.mxu0 0.0
  %597 = vmatmul.mubr.f32.gmra.mxu0 %v422
  %v598 = vpop.f32.mrf.mxu0
  %v599 = vadd.f32 %v364, %v598
  %v600 = vpop.f32.mrf.mxu0
  %601 = vmatprep.mubr.f32.mxu0 0.0
  %602 = vmatmul.mubr.f32.gmra.mxu0 %v425
  %v603 = vpop.f32.mrf.mxu0
  %v604 = vadd.f32 %v364, %v603
  %v605 = vpop.f32.mrf.mxu0
  %606 = vmatprep.mubr.f32.mxu0 0.0
  %607 = vmatmul.mubr.f32.gmra.mxu0 %v428
  %v608 = vpop.f32.mrf.mxu0
  %v609 = vadd.f32 %v364, %v608
  %v610 = vpop.f32.mrf.mxu0
  %611 = vmatprep.mubr.f32.mxu0 0.0
  %612 = vmatmul.mubr.f32.gmra.mxu0 %v431
  %v613 = vpop.f32.mrf.mxu0
  %v614 = vadd.f32 %v364, %v613
  %v615 = vpop.f32.mrf.mxu0
  %616 = vmatprep.mubr.f32.mxu0 0.0
  %617 = vmatmul.mubr.f32.gmra.mxu0 %v434
  %v618 = vpop.f32.mrf.mxu0
  %v619 = vadd.f32 %v364, %v618
  %v620 = vpop.f32.mrf.mxu0
  %621 = vmatprep.mubr.f32.mxu0 0.0
  %622 = vmatmul.mubr.f32.gmra.mxu0 %v437
  %v623 = vpop.f32.mrf.mxu0
  %v624 = vadd.f32 %v364, %v623
  %v625 = vpop.f32.mrf.mxu0
  %626 = vmatprep.mubr.f32.mxu0 0.0
  %627 = vmatmul.mubr.f32.gmra.mxu0 %v440
  %v628 = vpop.f32.mrf.mxu0
  %v629 = vadd.f32 %v364, %v628
  %v630 = vpop.f32.mrf.mxu0
  %631 = vdwg.mxu0
  %v632 = vmax.f32 %v509, 0.0
  %v633 = vmax.f32 %v514, 0.0
  %v634 = vmax.f32 %v519, 0.0
  %v635 = vmax.f32 %v524, 0.0
  %v636 = vmax.f32 %v529, 0.0
  %v637 = vmax.f32 %v534, 0.0
  %v638 = vmax.f32 %v539, 0.0
  %v639 = vmax.f32 %v544, 0.0
  %v640 = vmax.f32 %v549, 0.0
  %v641 = vmax.f32 %v554, 0.0
  %v642 = vmax.f32 %v559, 0.0
  %v643 = vmax.f32 %v564, 0.0
  %v644 = vmax.f32 %v569, 0.0
  %v645 = vmax.f32 %v574, 0.0
  %v646 = vmax.f32 %v579, 0.0
  %v647 = vmax.f32 %v584, 0.0
  %v648 = vmax.f32 %v589, 0.0
  %v649 = vmax.f32 %v594, 0.0
  %v650 = vmax.f32 %v599, 0.0
  %v651 = vmax.f32 %v604, 0.0
  %v652 = vmax.f32 %v609, 0.0
  %v653 = vmax.f32 %v614, 0.0
  %v654 = vmax.f32 %v619, 0.0
  %v655 = vmax.f32 %v624, 0.0
  %v656 = vmax.f32 %v629, 0.0
  %v657 = vld [vmem:[%s5] sm:$0xff]
  %v658 = vld [vmem:[%s5 + $0x8] sm:$0xff]
  %v659 = vld [vmem:[%s5 + $0x10] sm:$0xff]
  %v660 = vld [vmem:[%s5 + $0x18] sm:$0xff]
  %v661 = vld [vmem:[%s6] sm:$0x1]
  %v663 = vlaneseq
  %v664 = vshrl.u32 %v663, 7
  %v665 = vsub.s32 0, %v664
  %v666 = vrot.slane %v661, %v665
  %vm668 = vcmask 261120
  %v670 = vsel %vm668, %v632, 0
  %v673 = vsel %vm668, %v633, 0
  %v676 = vsel %vm668, %v634, 0
  %v679 = vsel %vm668, %v635, 0
  %v682 = vsel %vm668, %v636, 0
  %v685 = vsel %vm668, %v637, 0
  %v688 = vsel %vm668, %v638, 0
  %v691 = vsel %vm668, %v639, 0
  %v694 = vsel %vm668, %v640, 0
  %v697 = vsel %vm668, %v641, 0
  %v700 = vsel %vm668, %v642, 0
  %v703 = vsel %vm668, %v643, 0
  %v706 = vsel %vm668, %v644, 0
  %v709 = vsel %vm668, %v645, 0
  %v712 = vsel %vm668, %v646, 0
  %v715 = vsel %vm668, %v647, 0
  %v718 = vsel %vm668, %v648, 0
  %v721 = vsel %vm668, %v649, 0
  %v724 = vsel %vm668, %v650, 0
  %v727 = vsel %vm668, %v651, 0
  %v730 = vsel %vm668, %v652, 0
  %v733 = vsel %vm668, %v653, 0
  %v736 = vsel %vm668, %v654, 0
  %v739 = vsel %vm668, %v655, 0
  %v742 = vsel %vm668, %v656, 0
  %744 = vmatprep.subr.mxu0 0.0
  %745 = vmatpush1.msra.mxu0 0.0
  %746 = vmatprep.subr.mxu0 0.0
  %747 = vmatpush1.msra.mxu0 0.0
  %748 = vmatprep.subr.mxu0 0.0
  %749 = vmatpush1.msra.mxu0 0.0
  %750 = vmatprep.subr.mxu0 0.0
  %751 = vmatpush1.msra.mxu0 0.0
  %752 = vmatprep.subr.mxu0 0.0
  %753 = vmatpush1.msra.mxu0 0.0
  %754 = vmatprep.subr.mxu0 0.0
  %755 = vmatpush1.msra.mxu0 0.0
  %756 = vmatprep.subr.mxu0 0.0
  %757 = vmatpush1.msra.mxu0 0.0
  %758 = vmatprep.subr.mxu0 0.0
  %759 = vmatpush1.msra.mxu0 0.0
  %760 = vmatprep.subr.mxu0 0.0
  %761 = vmatpush1.msra.mxu0 0.0
  %762 = vmatprep.subr.mxu0 0.0
  %763 = vmatpush1.msra.mxu0 0.0
  %764 = vmatprep.subr.mxu0 0.0
  %765 = vmatpush1.msra.mxu0 0.0
  %766 = vmatprep.subr.mxu0 0.0
  %767 = vmatpush1.msra.mxu0 0.0
  %768 = vmatprep.subr.mxu0 0.0
  %769 = vmatpush1.msra.mxu0 %v660
  %770 = vmatprep.subr.mxu0 0.0
  %771 = vmatpush1.msra.mxu0 %v659
  %772 = vmatprep.subr.mxu0 0.0
  %773 = vmatpush1.msra.mxu0 %v658
  %774 = vmatprep.subr.mxu0 0.0
  %775 = vmatpush1.msra.mxu0 %v657
  %776 = vmatprep.subr.mxu0 0.0
  %777 = vmatpush2.msra.mxu0 0.0
  %778 = vmatprep.subr.mxu0 0.0
  %779 = vmatpush2.msra.mxu0 0.0
  %780 = vmatprep.subr.mxu0 0.0
  %781 = vmatpush2.msra.mxu0 0.0
  %782 = vmatprep.subr.mxu0 0.0
  %783 = vmatpush2.msra.mxu0 0.0
  %784 = vmatprep.subr.mxu0 0.0
  %785 = vmatpush2.msra.mxu0 0.0
  %786 = vmatprep.subr.mxu0 0.0
  %787 = vmatpush2.msra.mxu0 0.0
  %788 = vmatprep.subr.mxu0 0.0
  %789 = vmatpush2.msra.mxu0 0.0
  %790 = vmatprep.subr.mxu0 0.0
  %791 = vmatpush2.msra.mxu0 0.0
  %792 = vmatprep.subr.mxu0 0.0
  %793 = vmatpush2.msra.mxu0 0.0
  %794 = vmatprep.subr.mxu0 0.0
  %795 = vmatpush2.msra.mxu0 0.0
  %796 = vmatprep.subr.mxu0 0.0
  %797 = vmatpush2.msra.mxu0 0.0
  %798 = vmatprep.subr.mxu0 0.0
  %799 = vmatpush2.msra.mxu0 0.0
  %800 = vmatprep.subr.mxu0 0.0
  %801 = vmatpush2.msra.mxu0 0.0
  %802 = vmatprep.subr.mxu0 0.0
  %803 = vmatpush2.msra.mxu0 0.0
  %804 = vmatprep.subr.mxu0 0.0
  %805 = vmatpush2.msra.mxu0 0.0
  %806 = vmatprep.subr.mxu0 0.0
  %807 = vmatpush2.msra.mxu0 0.0
  %808 = vmatprep.mubr.f32.mxu0 0.0
  %809 = vmatmul.mubr.f32.gmra.mxu0 %v670
  %v810 = vpop.f32.mrf.mxu0
  %v811 = vadd.f32 %v666, %v810
  %v812 = vpop.f32.mrf.mxu0
  %813 = vmatprep.mubr.f32.mxu0 0.0
  %814 = vmatmul.mubr.f32.gmra.mxu0 %v673
  %v815 = vpop.f32.mrf.mxu0
  %v816 = vadd.f32 %v666, %v815
  %v817 = vpop.f32.mrf.mxu0
  %818 = vmatprep.mubr.f32.mxu0 0.0
  %819 = vmatmul.mubr.f32.gmra.mxu0 %v676
  %v820 = vpop.f32.mrf.mxu0
  %v821 = vadd.f32 %v666, %v820
  %v822 = vpop.f32.mrf.mxu0
  %823 = vmatprep.mubr.f32.mxu0 0.0
  %824 = vmatmul.mubr.f32.gmra.mxu0 %v679
  %v825 = vpop.f32.mrf.mxu0
  %v826 = vadd.f32 %v666, %v825
  %v827 = vpop.f32.mrf.mxu0
  %828 = vmatprep.mubr.f32.mxu0 0.0
  %829 = vmatmul.mubr.f32.gmra.mxu0 %v682
  %v830 = vpop.f32.mrf.mxu0
  %v831 = vadd.f32 %v666, %v830
  %v832 = vpop.f32.mrf.mxu0
  %833 = vmatprep.mubr.f32.mxu0 0.0
  %834 = vmatmul.mubr.f32.gmra.mxu0 %v685
  %v835 = vpop.f32.mrf.mxu0
  %v836 = vadd.f32 %v666, %v835
  %v837 = vpop.f32.mrf.mxu0
  %838 = vmatprep.mubr.f32.mxu0 0.0
  %839 = vmatmul.mubr.f32.gmra.mxu0 %v688
  %v840 = vpop.f32.mrf.mxu0
  %v841 = vadd.f32 %v666, %v840
  %v842 = vpop.f32.mrf.mxu0
  %843 = vmatprep.mubr.f32.mxu0 0.0
  %844 = vmatmul.mubr.f32.gmra.mxu0 %v691
  %v845 = vpop.f32.mrf.mxu0
  %v846 = vadd.f32 %v666, %v845
  %v847 = vpop.f32.mrf.mxu0
  %848 = vmatprep.mubr.f32.mxu0 0.0
  %849 = vmatmul.mubr.f32.gmra.mxu0 %v694
  %v850 = vpop.f32.mrf.mxu0
  %v851 = vadd.f32 %v666, %v850
  %v852 = vpop.f32.mrf.mxu0
  %853 = vmatprep.mubr.f32.mxu0 0.0
  %854 = vmatmul.mubr.f32.gmra.mxu0 %v697
  %v855 = vpop.f32.mrf.mxu0
  %v856 = vadd.f32 %v666, %v855
  %v857 = vpop.f32.mrf.mxu0
  %858 = vmatprep.mubr.f32.mxu0 0.0
  %859 = vmatmul.mubr.f32.gmra.mxu0 %v700
  %v860 = vpop.f32.mrf.mxu0
  %v861 = vadd.f32 %v666, %v860
  %v862 = vpop.f32.mrf.mxu0
  %863 = vmatprep.mubr.f32.mxu0 0.0
  %864 = vmatmul.mubr.f32.gmra.mxu0 %v703
  %v865 = vpop.f32.mrf.mxu0
  %v866 = vadd.f32 %v666, %v865
  %v867 = vpop.f32.mrf.mxu0
  %868 = vmatprep.mubr.f32.mxu0 0.0
  %869 = vmatmul.mubr.f32.gmra.mxu0 %v706
  %v870 = vpop.f32.mrf.mxu0
  %v871 = vadd.f32 %v666, %v870
  %v872 = vpop.f32.mrf.mxu0
  %873 = vmatprep.mubr.f32.mxu0 0.0
  %874 = vmatmul.mubr.f32.gmra.mxu0 %v709
  %v875 = vpop.f32.mrf.mxu0
  %v876 = vadd.f32 %v666, %v875
  %v877 = vpop.f32.mrf.mxu0
  %878 = vmatprep.mubr.f32.mxu0 0.0
  %879 = vmatmul.mubr.f32.gmra.mxu0 %v712
  %v880 = vpop.f32.mrf.mxu0
  %v881 = vadd.f32 %v666, %v880
  %v882 = vpop.f32.mrf.mxu0
  %883 = vmatprep.mubr.f32.mxu0 0.0
  %884 = vmatmul.mubr.f32.gmra.mxu0 %v715
  %v885 = vpop.f32.mrf.mxu0
  %v886 = vadd.f32 %v666, %v885
  %v887 = vpop.f32.mrf.mxu0
  %888 = vmatprep.mubr.f32.mxu0 0.0
  %889 = vmatmul.mubr.f32.gmra.mxu0 %v718
  %v890 = vpop.f32.mrf.mxu0
  %v891 = vadd.f32 %v666, %v890
  %v892 = vpop.f32.mrf.mxu0
  %893 = vmatprep.mubr.f32.mxu0 0.0
  %894 = vmatmul.mubr.f32.gmra.mxu0 %v721
  %v895 = vpop.f32.mrf.mxu0
  %v896 = vadd.f32 %v666, %v895
  %v897 = vpop.f32.mrf.mxu0
  %898 = vmatprep.mubr.f32.mxu0 0.0
  %899 = vmatmul.mubr.f32.gmra.mxu0 %v724
  %v900 = vpop.f32.mrf.mxu0
  %v901 = vadd.f32 %v666, %v900
  %v902 = vpop.f32.mrf.mxu0
  %903 = vmatprep.mubr.f32.mxu0 0.0
  %904 = vmatmul.mubr.f32.gmra.mxu0 %v727
  %v905 = vpop.f32.mrf.mxu0
  %v906 = vadd.f32 %v666, %v905
  %v907 = vpop.f32.mrf.mxu0
  %908 = vmatprep.mubr.f32.mxu0 0.0
  %909 = vmatmul.mubr.f32.gmra.mxu0 %v730
  %v910 = vpop.f32.mrf.mxu0
  %v911 = vadd.f32 %v666, %v910
  %v912 = vpop.f32.mrf.mxu0
  %913 = vmatprep.mubr.f32.mxu0 0.0
  %914 = vmatmul.mubr.f32.gmra.mxu0 %v733
  %v915 = vpop.f32.mrf.mxu0
  %v916 = vadd.f32 %v666, %v915
  %v917 = vpop.f32.mrf.mxu0
  %918 = vmatprep.mubr.f32.mxu0 0.0
  %919 = vmatmul.mubr.f32.gmra.mxu0 %v736
  %v920 = vpop.f32.mrf.mxu0
  %v921 = vadd.f32 %v666, %v920
  %v922 = vpop.f32.mrf.mxu0
  %923 = vmatprep.mubr.f32.mxu0 0.0
  %924 = vmatmul.mubr.f32.gmra.mxu0 %v739
  %v925 = vpop.f32.mrf.mxu0
  %v926 = vadd.f32 %v666, %v925
  %v927 = vpop.f32.mrf.mxu0
  %928 = vmatprep.mubr.f32.mxu0 0.0
  %929 = vmatmul.mubr.f32.gmra.mxu0 %v742
  %v930 = vpop.f32.mrf.mxu0
  %v931 = vadd.f32 %v666, %v930
  %v932 = vpop.f32.mrf.mxu0
  %933 = vdwg.mxu0
  %934 = vst [vmem:[%s7] sm:$0xff] %v811
  %935 = vst [vmem:[%s7 + $0x8] sm:$0xff] %v816
  %936 = vst [vmem:[%s7 + $0x10] sm:$0xff] %v821
  %937 = vst [vmem:[%s7 + $0x18] sm:$0xff] %v826
  %938 = vst [vmem:[%s7 + $0x20] sm:$0xff] %v831
  %939 = vst [vmem:[%s7 + $0x28] sm:$0xff] %v836
  %940 = vst [vmem:[%s7 + $0x30] sm:$0xff] %v841
  %941 = vst [vmem:[%s7 + $0x38] sm:$0xff] %v846
  %942 = vst [vmem:[%s7 + $0x40] sm:$0xff] %v851
  %943 = vst [vmem:[%s7 + $0x48] sm:$0xff] %v856
  %944 = vst [vmem:[%s7 + $0x50] sm:$0xff] %v861
  %945 = vst [vmem:[%s7 + $0x58] sm:$0xff] %v866
  %946 = vst [vmem:[%s7 + $0x60] sm:$0xff] %v871
  %947 = vst [vmem:[%s7 + $0x68] sm:$0xff] %v876
  %948 = vst [vmem:[%s7 + $0x70] sm:$0xff] %v881
  %949 = vst [vmem:[%s7 + $0x78] sm:$0xff] %v886
  %950 = vst [vmem:[%s7 + $0x80] sm:$0xff] %v891
  %951 = vst [vmem:[%s7 + $0x88] sm:$0xff] %v896
  %952 = vst [vmem:[%s7 + $0x90] sm:$0xff] %v901
  %953 = vst [vmem:[%s7 + $0x98] sm:$0xff] %v906
  %954 = vst [vmem:[%s7 + $0xa0] sm:$0xff] %v911
  %955 = vst [vmem:[%s7 + $0xa8] sm:$0xff] %v916
  %956 = vst [vmem:[%s7 + $0xb0] sm:$0xff] %v921
  %957 = vst [vmem:[%s7 + $0xb8] sm:$0xff] %v926
  %958 = vst [vmem:[%s7 + $0xc0] sm:$0xff] %v931
  // Predicated region
  $region30: #{mlp_pallas.1} parent=0 // pred_check
    _
  $region31: #{mlp_pallas.1} parent=0 // pred_check_branch
    %960 = sbr.rel (0) target = $region33
  $region32: #{mlp_pallas.1} parent=0 // pred_region
    _
  $region33: #{mlp_pallas.1} parent=0 // pred_fallthru
    _
  // Predicated region
  $region34: #{mlp_pallas.1} parent=0 // pred_check
    _
  $region35: #{mlp_pallas.1} parent=0 // pred_check_branch
    %962 = sbr.rel (0) target = $region37
  $region36: #{mlp_pallas.1} parent=0 // pred_region
    _
  $region37: #{mlp_pallas.1} parent=0 // pred_fallthru
    _

</llo_original>
